<compile_context>
chip_gen: v6e
topology: v6e:2x2x1
jax: 0.10.0
libtpu: 0.0.40
codegen_flags: <defaults>
</compile_context>

<pallas_src>
import jax
import jax.numpy as jnp
from jax.experimental import pallas as pl
from jax.experimental.pallas import tpu as pltpu


def h_dyna_cell(x_t, h_prev, h_history, params, mxu_dtype=jnp.float32):
    """x_t: (B, N, I), h_prev: (B, N, H), h_history: (B, N, S_local, H)."""
    B, N, S_L, H = h_history.shape
    I = x_t.shape[-1]
    LB = params["local_memory_bank"]      # (M_L, S_L, P)
    GB = params["global_memory_bank"]     # (M_G, S_G, P)
    M_L, _, P = LB.shape
    M_G, S_G, _ = GB.shape
    # TODO(synk): general adaptive_avg_pool1d bins for non-divisible S_local/S_global.
    assert S_L % S_G == 0
    k = S_L // S_G
    M_T = M_L + M_G

    # ---- glue: node-major layout ----
    # TODO(synk): keep the history buffer stored as (N, B, S_L*H) across timesteps to
    # avoid this full HBM round-trip of the largest input every cell invocation.
    hist_k = jnp.transpose(h_history, (1, 0, 2, 3)).reshape(N, B, S_L * H)
    x_k = jnp.transpose(x_t, (1, 0, 2))                       # (N, B, I)
    h_k = jnp.transpose(h_prev, (1, 0, 2))                    # (N, B, H)  (stays f32)
    comb_k = jnp.concatenate([x_k, h_k], axis=-1)             # (N, B, I+H)

    # ---- fold query MLP + bias + global avg-pool into the similarity weights ----
    wq, bq = params["wq"], params["bq"]                       # (P, H), (P,)
    gb_rep = jnp.repeat(GB, k, axis=1) / k                    # (M_G, S_L, P)
    w_sim_l = jnp.einsum("ph,msp->shm", wq, LB).reshape(S_L * H, M_L)
    w_sim_g = jnp.einsum("ph,msp->shm", wq, gb_rep).reshape(S_L * H, M_G)
    w_sim = jnp.concatenate([w_sim_l, w_sim_g], axis=-1)      # (S_L*H, M_T)
    b_sim = jnp.concatenate([jnp.einsum("p,msp->m", bq, LB),
                             jnp.einsum("p,msp->m", bq, gb_rep)]).reshape(1, M_T)

    # ---- fold (bank-mean @ node-specific projection) into one matrix per node ----
    nsw = jnp.einsum("nd,dfh->nfh", params["node_embedding"], params["weight_pool"])
    bp = jnp.concatenate(
        [jnp.einsum("mp,nph->nmh", LB.mean(axis=1), nsw[:, :P, :]),
         jnp.einsum("mp,nph->nmh", GB.mean(axis=1), nsw[:, P:, :])],
        axis=1)                                               # (N, M_T, H)

    # ---- fused GRU gate weights: [x|h] @ (I+H, 3H); separate (H,H) for (r*h) ----
    wz = params["w_update"].T                                 # (I+H, H)
    wr = params["w_reset"].T
    wc = params["w_cand"].T
    wcx_pad = jnp.concatenate([wc[:I, :], jnp.zeros((H, H), wc.dtype)], axis=0)
    wg3 = jnp.concatenate([wz, wr, wcx_pad], axis=-1)         # (I+H, 3H)
    bg3 = jnp.concatenate([params["b_update"], params["b_reset"],
                           params["b_cand"]]).reshape(1, 3 * H)
    wch = wc[I:, :]                                           # (H, H)

    # MXU operands (optionally bf16 on v6e/v7x); biases / h_prev / VPU math stay f32.
    hist_k = hist_k.astype(mxu_dtype)
    comb_k = comb_k.astype(mxu_dtype)
    w_sim = w_sim.astype(mxu_dtype)
    bp = bp.astype(mxu_dtype)
    wg3 = wg3.astype(mxu_dtype)
    wch = wch.astype(mxu_dtype)

    def kernel(hist_ref, comb_ref, hprev_ref,
               wsim_ref, bsim_ref, bp_ref,
               wg3_ref, bg3_ref, wch_ref, out_ref):
        hist = hist_ref[0]                                    # (B, S_L*H)
        comb = comb_ref[0]                                    # (B, I+H)
        hp = hprev_ref[0]                                     # (B, H), f32

        # --- DCMN similarity: single deep-K matmul (query MLP folded into banks) ---
        sim = jnp.dot(hist, wsim_ref[...],
                      preferred_element_type=jnp.float32) + bsim_ref[...]   # (B, M_T)
        sim_l = sim[:, :M_L]
        sim_g = sim[:, M_L:]
        e_l = jnp.exp(sim_l - jnp.max(sim_l, axis=-1, keepdims=True))
        e_g = jnp.exp(sim_g - jnp.max(sim_g, axis=-1, keepdims=True))
        attn_l = e_l * pl.reciprocal(jnp.sum(e_l, axis=-1, keepdims=True))
        attn_g = e_g * pl.reciprocal(jnp.sum(e_g, axis=-1, keepdims=True))
        attn = jnp.concatenate([attn_l, attn_g], axis=-1)     # (B, M_T)

        # --- node-specific context: attn @ (bank-mean @ node weights), pre-folded ---
        ctx = jnp.dot(attn.astype(bp_ref.dtype), bp_ref[0],
                      preferred_element_type=jnp.float32)     # (B, H)

        # --- fused GRU gates: one (B, I+H)@(I+H, 3H) + one (B, H)@(H, H) ---
        g = jnp.dot(comb, wg3_ref[...],
                    preferred_element_type=jnp.float32) + bg3_ref[...]      # (B, 3H)
        z = jax.nn.sigmoid(g[:, :H])
        r = jax.nn.sigmoid(g[:, H:2 * H])
        cand = jnp.tanh(g[:, 2 * H:]
                        + jnp.dot((r * hp).astype(wch_ref.dtype), wch_ref[...],
                                  preferred_element_type=jnp.float32)
                        + ctx)
        out_ref[0] = (1.0 - z) * hp + z * cand

    grid_spec = pltpu.PrefetchScalarGridSpec(
        num_scalar_prefetch=0,
        grid=(N,),
        in_specs=[
            pl.BlockSpec((1, B, S_L * H), lambda n: (n, 0, 0)),   # hist
            pl.BlockSpec((1, B, I + H), lambda n: (n, 0, 0)),     # [x | h_prev]
            pl.BlockSpec((1, B, H), lambda n: (n, 0, 0)),         # h_prev (f32)
            pl.BlockSpec((S_L * H, M_T), lambda n: (0, 0)),       # folded sim weights
            pl.BlockSpec((1, M_T), lambda n: (0, 0)),             # folded sim bias
            pl.BlockSpec((1, M_T, H), lambda n: (n, 0, 0)),       # per-node projection
            pl.BlockSpec((I + H, 3 * H), lambda n: (0, 0)),       # fused gate weights
            pl.BlockSpec((1, 3 * H), lambda n: (0, 0)),           # fused gate biases
            pl.BlockSpec((H, H), lambda n: (0, 0)),               # cand h-weight
        ],
        out_specs=pl.BlockSpec((1, B, H), lambda n: (n, 0, 0)),
    )

    out = pl.pallas_call(
        kernel,
        out_shape=jax.ShapeDtypeStruct((N, B, H), jnp.float32),
        grid_spec=grid_spec,
        compiler_params=pltpu.CompilerParams(
            dimension_semantics=("parallel",),          # v7x: split nodes across 2 TCs
            vmem_limit_bytes=32 * 1024 * 1024),
    )(hist_k, comb_k, h_k, w_sim, b_sim, bp, wg3, bg3, wch)

    return jnp.transpose(out, (1, 0, 2))                  # (B, N, H)


def reference(x_t, h_prev, h_history, params):
    """Pure-JAX mirror of the PyTorch forward (for verification)."""
    B, N, S_L, H = h_history.shape
    LB = params["local_memory_bank"]
    GB = params["global_memory_bank"]
    M_L, _, P = LB.shape
    M_G, S_G, _ = GB.shape

    hh = h_history.reshape(-1, S_L, H)
    q = jnp.einsum("xsh,ph->xsp", hh, params["wq"]) + params["bq"]
    sim_l = jnp.einsum("xsp,msp->xm", q, LB)
    attn_l = jax.nn.softmax(sim_l, axis=-1)
    if S_L != S_G:
        qg = q.reshape(-1, S_G, S_L // S_G, P).mean(axis=2)
    else:
        qg = q
    sim_g = jnp.einsum("xsp,msp->xm", qg, GB)
    attn_g = jax.nn.softmax(sim_g, axis=-1)
    lc = jnp.einsum("xm,msp->xp", attn_l, LB) / S_L
    gc = jnp.einsum("xm,msp->xp", attn_g, GB) / S_G
    fused = jnp.concatenate([lc, gc], axis=-1).reshape(B, N, 2 * P)
    nsw = jnp.einsum("nd,dfh->nfh", params["node_embedding"], params["weight_pool"])
    ctx = jnp.einsum("bnd,ndh->bnh", fused, nsw)

    comb = jnp.concatenate([x_t, h_prev], axis=-1)
    z = jax.nn.sigmoid(comb @ params["w_update"].T + params["b_update"])
    r = jax.nn.sigmoid(comb @ params["w_reset"].T + params["b_reset"])
    comb_c = jnp.concatenate([x_t, r * h_prev], axis=-1)
    cand = jnp.tanh(comb_c @ params["w_cand"].T + params["b_cand"] + ctx)
    return (1.0 - z) * h_prev + z * cand


if __name__ == "__main__":
    # module hyper-params (small, consistent with the forward)
    B, N = 2, 4                 # batch, num_nodes
    I, H = 4, 32                # input_dim, hidden_dim
    D, P = 8, 16                # node_embed_dim, pattern_dim
    M_G, S_G = 8, 4             # global memory bank
    M_L, S_L = 8, 8             # local memory bank

    key = jax.random.PRNGKey(0)
    ks = jax.random.split(key, 16)
    params = dict(
        global_memory_bank=jax.random.normal(ks[0], (M_G, S_G, P), jnp.float32),
        local_memory_bank=jax.random.normal(ks[1], (M_L, S_L, P), jnp.float32),
        wq=0.1 * jax.random.normal(ks[2], (P, H), jnp.float32),        # history_to_query_mlp.weight
        bq=0.1 * jax.random.normal(ks[3], (P,), jnp.float32),          # history_to_query_mlp.bias
        node_embedding=jax.random.normal(ks[4], (N, D), jnp.float32),
        weight_pool=0.1 * jax.random.normal(ks[5], (D, 2 * P, H), jnp.float32),
        w_update=0.1 * jax.random.normal(ks[6], (H, I + H), jnp.float32),
        b_update=0.1 * jax.random.normal(ks[7], (H,), jnp.float32),
        w_reset=0.1 * jax.random.normal(ks[8], (H, I + H), jnp.float32),
        b_reset=0.1 * jax.random.normal(ks[9], (H,), jnp.float32),
        w_cand=0.1 * jax.random.normal(ks[10], (H, I + H), jnp.float32),
        b_cand=0.1 * jax.random.normal(ks[11], (H,), jnp.float32),
    )

    x_t = jax.random.normal(ks[12], (B, N, I), jnp.float32)
    h_prev = jax.random.normal(ks[13], (B, N, H), jnp.float32)
    h_history = jax.random.normal(ks[14], (B, N, S_L, H), jnp.float32)

    out = h_dyna_cell(x_t, h_prev, h_history, params)
    out = jax.block_until_ready(out)

    ref = reference(x_t, h_prev, h_history, params)
    assert out.shape == (B, N, H)
    if not bool(jnp.allclose(out, ref, atol=1e-4, rtol=1e-4)):
        raise AssertionError("Pallas kernel output does not match JAX reference")
    print("KERNEL_OK")
</pallas_src>

<mosaic_0001>
module attributes {stable_mosaic.version = 11 : i64} {
  func.func @kernel(%arg0: i32, %arg1: memref<1x2x256xf32, #tpu.memory_space<vmem>>, %arg2: memref<1x2x36xf32, #tpu.memory_space<vmem>>, %arg3: memref<1x2x32xf32, #tpu.memory_space<vmem>>, %arg4: memref<256x16xf32, #tpu.memory_space<vmem>>, %arg5: memref<1x16xf32, #tpu.memory_space<vmem>>, %arg6: memref<1x16x32xf32, #tpu.memory_space<vmem>>, %arg7: memref<36x96xf32, #tpu.memory_space<vmem>>, %arg8: memref<1x96xf32, #tpu.memory_space<vmem>>, %arg9: memref<32x32xf32, #tpu.memory_space<vmem>>, %arg10: memref<1x2x32xf32, #tpu.memory_space<vmem>>) attributes {dimension_semantics = [#tpu.dimension_semantics<parallel>], iteration_bounds = array<i64: 4>, scalar_prefetch = 0 : i64, scratch_operands = 0 : i64, tpu.core_type = #tpu.core_type<tc>, window_params = [{transform_indices = @transform_0, window_bounds = array<i64: 1, 2, 256>}, {transform_indices = @transform_1, window_bounds = array<i64: 1, 2, 36>}, {transform_indices = @transform_2, window_bounds = array<i64: 1, 2, 32>}, {pipeline_mode = #tpu.pipeline_mode<synchronous>, transform_indices = @transform_3, window_bounds = array<i64: 256, 16>}, {pipeline_mode = #tpu.pipeline_mode<synchronous>, transform_indices = @transform_4, window_bounds = array<i64: 1, 16>}, {transform_indices = @transform_5, window_bounds = array<i64: 1, 16, 32>}, {pipeline_mode = #tpu.pipeline_mode<synchronous>, transform_indices = @transform_6, window_bounds = array<i64: 36, 96>}, {pipeline_mode = #tpu.pipeline_mode<synchronous>, transform_indices = @transform_7, window_bounds = array<i64: 1, 96>}, {pipeline_mode = #tpu.pipeline_mode<synchronous>, transform_indices = @transform_8, window_bounds = array<i64: 32, 32>}, {transform_indices = @transform_9, window_bounds = array<i64: 1, 2, 32>}]} {
    %c0 = arith.constant 0 : index
    %c0_0 = arith.constant 0 : index
    %c0_1 = arith.constant 0 : index
    %0 = vector.load %arg1[%c0, %c0_0, %c0_1] : memref<1x2x256xf32, #tpu.memory_space<vmem>>, vector<1x2x256xf32>
    %1 = vector.shape_cast %0 : vector<1x2x256xf32> to vector<2x256xf32>
    %c0_2 = arith.constant 0 : index
    %c0_3 = arith.constant 0 : index
    %c0_4 = arith.constant 0 : index
    %2 = vector.load %arg2[%c0_2, %c0_3, %c0_4] : memref<1x2x36xf32, #tpu.memory_space<vmem>>, vector<1x2x36xf32>
    %3 = vector.shape_cast %2 : vector<1x2x36xf32> to vector<2x36xf32>
    %c0_5 = arith.constant 0 : index
    %c0_6 = arith.constant 0 : index
    %c0_7 = arith.constant 0 : index
    %4 = vector.load %arg3[%c0_5, %c0_6, %c0_7] : memref<1x2x32xf32, #tpu.memory_space<vmem>>, vector<1x2x32xf32>
    %5 = vector.shape_cast %4 : vector<1x2x32xf32> to vector<2x32xf32>
    %c0_8 = arith.constant 0 : index
    %c0_9 = arith.constant 0 : index
    %6 = vector.load %arg4[%c0_8, %c0_9] : memref<256x16xf32, #tpu.memory_space<vmem>>, vector<256x16xf32>
    %cst = arith.constant dense<0.000000e+00> : vector<2x16xf32>
    %7 = tpu.matmul %1, %6, %cst {dimension_numbers = #tpu.dot_dimension_numbers<[1], [0], [0], [1], [0, 0, 1, 1], [], []>} : vector<2x256xf32>, vector<256x16xf32>, vector<2x16xf32> -> vector<2x16xf32>
    %c0_10 = arith.constant 0 : index
    %c0_11 = arith.constant 0 : index
    %8 = vector.load %arg5[%c0_10, %c0_11] : memref<1x16xf32, #tpu.memory_space<vmem>>, vector<1x16xf32>
    %9 = vector.broadcast %8 : vector<1x16xf32> to vector<2x16xf32>
    %10 = arith.addf %7, %9 : vector<2x16xf32>
    %11 = vector.extract_strided_slice %10 {offsets = [0, 0], sizes = [2, 8], strides = [1, 1]} : vector<2x16xf32> to vector<2x8xf32>
    %12 = vector.extract_strided_slice %10 {offsets = [0, 8], sizes = [2, 8], strides = [1, 1]} : vector<2x16xf32> to vector<2x8xf32>
    %cst_12 = arith.constant dense<0xFF800000> : vector<2xf32>
    %13 = vector.multi_reduction <maximumf>, %11, %cst_12 [1] : vector<2x8xf32> to vector<2xf32>
    %14 = vector.shape_cast %13 : vector<2xf32> to vector<2x1xf32>
    %15 = vector.broadcast %14 : vector<2x1xf32> to vector<2x8xf32>
    %16 = arith.subf %11, %15 : vector<2x8xf32>
    %17 = math.exp %16 : vector<2x8xf32>
    %cst_13 = arith.constant dense<0xFF800000> : vector<2xf32>
    %18 = vector.multi_reduction <maximumf>, %12, %cst_13 [1] : vector<2x8xf32> to vector<2xf32>
    %19 = vector.shape_cast %18 : vector<2xf32> to vector<2x1xf32>
    %20 = vector.broadcast %19 : vector<2x1xf32> to vector<2x8xf32>
    %21 = arith.subf %12, %20 : vector<2x8xf32>
    %22 = math.exp %21 : vector<2x8xf32>
    %cst_14 = arith.constant dense<0.000000e+00> : vector<2xf32>
    %23 = vector.multi_reduction <add>, %17, %cst_14 [1] : vector<2x8xf32> to vector<2xf32>
    %24 = vector.shape_cast %23 : vector<2xf32> to vector<2x1xf32>
    %25 = tpu.reciprocal %24 : vector<2x1xf32> -> vector<2x1xf32>
    %26 = vector.broadcast %25 : vector<2x1xf32> to vector<2x8xf32>
    %27 = arith.mulf %17, %26 : vector<2x8xf32>
    %cst_15 = arith.constant dense<0.000000e+00> : vector<2xf32>
    %28 = vector.multi_reduction <add>, %22, %cst_15 [1] : vector<2x8xf32> to vector<2xf32>
    %29 = vector.shape_cast %28 : vector<2xf32> to vector<2x1xf32>
    %30 = tpu.reciprocal %29 : vector<2x1xf32> -> vector<2x1xf32>
    %31 = vector.broadcast %30 : vector<2x1xf32> to vector<2x8xf32>
    %32 = arith.mulf %22, %31 : vector<2x8xf32>
    %33 = tpu.concatenate %27, %32 in 1 : vector<2x8xf32>, vector<2x8xf32> -> vector<2x16xf32>
    %c0_16 = arith.constant 0 : index
    %c0_17 = arith.constant 0 : index
    %c0_18 = arith.constant 0 : index
    %34 = vector.load %arg6[%c0_16, %c0_17, %c0_18] : memref<1x16x32xf32, #tpu.memory_space<vmem>>, vector<1x16x32xf32>
    %35 = vector.shape_cast %34 : vector<1x16x32xf32> to vector<16x32xf32>
    %cst_19 = arith.constant dense<0.000000e+00> : vector<2x32xf32>
    %36 = tpu.matmul %33, %35, %cst_19 {dimension_numbers = #tpu.dot_dimension_numbers<[1], [0], [0], [1], [0, 0, 1, 1], [], []>} : vector<2x16xf32>, vector<16x32xf32>, vector<2x32xf32> -> vector<2x32xf32>
    %c0_20 = arith.constant 0 : index
    %c0_21 = arith.constant 0 : index
    %37 = vector.load %arg7[%c0_20, %c0_21] : memref<36x96xf32, #tpu.memory_space<vmem>>, vector<36x96xf32>
    %cst_22 = arith.constant dense<0.000000e+00> : vector<2x96xf32>
    %38 = tpu.matmul %3, %37, %cst_22 {dimension_numbers = #tpu.dot_dimension_numbers<[1], [0], [0], [1], [0, 0, 1, 1], [], []>} : vector<2x36xf32>, vector<36x96xf32>, vector<2x96xf32> -> vector<2x96xf32>
    %c0_23 = arith.constant 0 : index
    %c0_24 = arith.constant 0 : index
    %39 = vector.load %arg8[%c0_23, %c0_24] : memref<1x96xf32, #tpu.memory_space<vmem>>, vector<1x96xf32>
    %40 = vector.broadcast %39 : vector<1x96xf32> to vector<2x96xf32>
    %41 = arith.addf %38, %40 : vector<2x96xf32>
    %42 = vector.extract_strided_slice %41 {offsets = [0, 0], sizes = [2, 32], strides = [1, 1]} : vector<2x96xf32> to vector<2x32xf32>
    %43 = arith.negf %42 : vector<2x32xf32>
    %44 = math.exp %43 : vector<2x32xf32>
    %cst_25 = arith.constant 1.000000e+00 : f32
    %45 = vector.broadcast %cst_25 : f32 to vector<2x32xf32>
    %46 = arith.addf %45, %44 : vector<2x32xf32>
    %47 = arith.divf %45, %46 : vector<2x32xf32>
    %48 = vector.extract_strided_slice %41 {offsets = [0, 32], sizes = [2, 32], strides = [1, 1]} : vector<2x96xf32> to vector<2x32xf32>
    %49 = arith.negf %48 : vector<2x32xf32>
    %50 = math.exp %49 : vector<2x32xf32>
    %cst_26 = arith.constant 1.000000e+00 : f32
    %51 = vector.broadcast %cst_26 : f32 to vector<2x32xf32>
    %52 = arith.addf %51, %50 : vector<2x32xf32>
    %53 = arith.divf %51, %52 : vector<2x32xf32>
    %54 = vector.extract_strided_slice %41 {offsets = [0, 64], sizes = [2, 32], strides = [1, 1]} : vector<2x96xf32> to vector<2x32xf32>
    %55 = arith.mulf %53, %5 : vector<2x32xf32>
    %c0_27 = arith.constant 0 : index
    %c0_28 = arith.constant 0 : index
    %56 = vector.load %arg9[%c0_27, %c0_28] : memref<32x32xf32, #tpu.memory_space<vmem>>, vector<32x32xf32>
    %cst_29 = arith.constant dense<0.000000e+00> : vector<2x32xf32>
    %57 = tpu.matmul %55, %56, %cst_29 {dimension_numbers = #tpu.dot_dimension_numbers<[1], [0], [0], [1], [0, 0, 1, 1], [], []>} : vector<2x32xf32>, vector<32x32xf32>, vector<2x32xf32> -> vector<2x32xf32>
    %58 = arith.addf %54, %57 : vector<2x32xf32>
    %59 = arith.addf %58, %36 : vector<2x32xf32>
    %60 = math.tanh %59 : vector<2x32xf32>
    %cst_30 = arith.constant 1.000000e+00 : f32
    %61 = vector.broadcast %cst_30 : f32 to vector<2x32xf32>
    %62 = arith.subf %61, %47 : vector<2x32xf32>
    %63 = arith.mulf %62, %5 : vector<2x32xf32>
    %64 = arith.mulf %47, %60 : vector<2x32xf32>
    %65 = arith.addf %63, %64 : vector<2x32xf32>
    %c0_31 = arith.constant 0 : index
    %c0_32 = arith.constant 0 : index
    %c0_33 = arith.constant 0 : index
    %66 = vector.load %arg10[%c0_31, %c0_32, %c0_33] : memref<1x2x32xf32, #tpu.memory_space<vmem>>, vector<1x2x32xf32>
    %67 = vector.shape_cast %66 : vector<1x2x32xf32> to vector<2x32xf32>
    %68 = vector.shape_cast %65 : vector<2x32xf32> to vector<1x2x32xf32>
    tpu.vector_store %arg10[%c0_31, %c0_32, %c0_33], %68 {strides = array<i32>} : memref<1x2x32xf32, #tpu.memory_space<vmem>>, vector<1x2x32xf32>,
    return
  }
  func.func @transform_0(%arg0: i32) -> (i32, i32, i32) {
    %c0_i32 = arith.constant 0 : i32
    %c0_i32_0 = arith.constant 0 : i32
    %c0_i32_1 = arith.constant 0 : i32
    return %arg0, %c0_i32, %c0_i32_0 : i32, i32, i32
  }
  func.func @transform_1(%arg0: i32) -> (i32, i32, i32) {
    %c0_i32 = arith.constant 0 : i32
    %c0_i32_0 = arith.constant 0 : i32
    %c0_i32_1 = arith.constant 0 : i32
    return %arg0, %c0_i32, %c0_i32_0 : i32, i32, i32
  }
  func.func @transform_2(%arg0: i32) -> (i32, i32, i32) {
    %c0_i32 = arith.constant 0 : i32
    %c0_i32_0 = arith.constant 0 : i32
    %c0_i32_1 = arith.constant 0 : i32
    return %arg0, %c0_i32, %c0_i32_0 : i32, i32, i32
  }
  func.func @transform_3(%arg0: i32) -> (i32, i32) {
    %c0_i32 = arith.constant 0 : i32
    %c0_i32_0 = arith.constant 0 : i32
    %c0_i32_1 = arith.constant 0 : i32
    return %c0_i32, %c0_i32_0 : i32, i32
  }
  func.func @transform_4(%arg0: i32) -> (i32, i32) {
    %c0_i32 = arith.constant 0 : i32
    %c0_i32_0 = arith.constant 0 : i32
    %c0_i32_1 = arith.constant 0 : i32
    return %c0_i32, %c0_i32_0 : i32, i32
  }
  func.func @transform_5(%arg0: i32) -> (i32, i32, i32) {
    %c0_i32 = arith.constant 0 : i32
    %c0_i32_0 = arith.constant 0 : i32
    %c0_i32_1 = arith.constant 0 : i32
    return %arg0, %c0_i32, %c0_i32_0 : i32, i32, i32
  }
  func.func @transform_6(%arg0: i32) -> (i32, i32) {
    %c0_i32 = arith.constant 0 : i32
    %c0_i32_0 = arith.constant 0 : i32
    %c0_i32_1 = arith.constant 0 : i32
    return %c0_i32, %c0_i32_0 : i32, i32
  }
  func.func @transform_7(%arg0: i32) -> (i32, i32) {
    %c0_i32 = arith.constant 0 : i32
    %c0_i32_0 = arith.constant 0 : i32
    %c0_i32_1 = arith.constant 0 : i32
    return %c0_i32, %c0_i32_0 : i32, i32
  }
  func.func @transform_8(%arg0: i32) -> (i32, i32) {
    %c0_i32 = arith.constant 0 : i32
    %c0_i32_0 = arith.constant 0 : i32
    %c0_i32_1 = arith.constant 0 : i32
    return %c0_i32, %c0_i32_0 : i32, i32
  }
  func.func @transform_9(%arg0: i32) -> (i32, i32, i32) {
    %c0_i32 = arith.constant 0 : i32
    %c0_i32_0 = arith.constant 0 : i32
    %c0_i32_1 = arith.constant 0 : i32
    return %arg0, %c0_i32, %c0_i32_0 : i32, i32, i32
  }
}

</mosaic_0001>

<llo_original>
// kernel: tpu_custom_call.1
$region0: #{tpu_custom_call.1}
  #allocation0 [shape = 'u32[]', space=smem, size = 0x4, offset = 0x4, fixed_abs, tag = 'smem constant byte address 0x4 - core index']
  #allocation1 [shape = 'u32[144,128]{1,0:T(1,128)}', space=vmem, size = 0x12000, scoped, tag = 'internal scratch']
  %s0 = inlined_call_operand.vmem [shape: f32[4,2,256], index: 0, kind: input, shape index: {}]
  %s1 = inlined_call_operand.vmem [shape: f32[4,2,36], index: 1, kind: input, shape index: {}]
  %s2 = inlined_call_operand.vmem [shape: f32[4,2,32], index: 2, kind: input, shape index: {}]
  %s3 = inlined_call_operand.vmem [shape: f32[256,16], index: 3, kind: input, shape index: {}]
  %s4 = inlined_call_operand.vmem [shape: f32[1,16], index: 4, kind: input, shape index: {}]
  %s5 = inlined_call_operand.vmem [shape: f32[4,16,32], index: 5, kind: input, shape index: {}]
  %s6 = inlined_call_operand.vmem [shape: f32[36,96], index: 6, kind: input, shape index: {}]
  %s7 = inlined_call_operand.vmem [shape: f32[1,96], index: 7, kind: input, shape index: {}]
  %s8 = inlined_call_operand.vmem [shape: f32[32,32], index: 8, kind: input, shape index: {}]
  %s9 = inlined_call_operand.hbm [shape: f32[4,2,32], index: 9, kind: output, shape index: {}]
  %s10 = sld [smem:[#allocation0]]
  $region69: #{tpu_custom_call.1} parent=0
    _
  %s12 = ssub.s32 1, %s10
  %s13 = scalar_select 0, %s12, %s10
  $region1: #{tpu_custom_call.1} parent=0
    #allocation2 [shape = 'u8[2048]{0}', space=vmem, size = 0x800, scoped, tag = 'output window, operand 0']
    #allocation3 [shape = 's32[2]{0}', space=sflag, size = 0x8, scoped, tag = 'scoped memory for tpu_custom_call.1']
    %14 = vsyncpa [#allocation3], 0
    %s15 = scalar_lea.sflag [#allocation3], 1
    %16 = vsyncpa %s15, 0
    loop: start=0, step=1, limit=6
    $region2: #{tpu_custom_call.1} parent=1 // loop_pre_header
      _
    $region3: #{tpu_custom_call.1} parent=1 // loop_header
      %s18 = sphi 0, %s22
      %p19 = scmp.ge.s32.totalorder %s18, 6
      %s28 = sphi 0, %s30
      %s31 = sphi 0, %s28
      %s32 = sphi 0, %s31
      %s48 = sphi 0, %s32
      %s54 = sphi 0, %s56
      %s57 = sphi 0, %s54
      %s58 = sphi 0, %s57
      %s74 = sphi 0, %s58
      %s80 = sphi 0, %s82
      %s83 = sphi 0, %s80
      %s84 = sphi 0, %s83
      %s100 = sphi 0, %s84
      %s104 = sphi 0, %s104
      %s106 = sphi 0, %s104
      %s107 = sphi 0, %s106
      %s121 = sphi 0, %s107
      %s125 = sphi 0, %s125
      %s127 = sphi 0, %s125
      %s128 = sphi 0, %s127
      %s142 = sphi 0, %s128
      %s148 = sphi 0, %s150
      %s151 = sphi 0, %s148
      %s152 = sphi 0, %s151
      %s168 = sphi 0, %s152
      %s172 = sphi 0, %s172
      %s174 = sphi 0, %s172
      %s175 = sphi 0, %s174
      %s189 = sphi 0, %s175
      %s193 = sphi 0, %s193
      %s195 = sphi 0, %s193
      %s196 = sphi 0, %s195
      %s210 = sphi 0, %s196
      %s214 = sphi 0, %s214
      %s216 = sphi 0, %s214
      %s217 = sphi 0, %s216
      %s231 = sphi 0, %s217
      %s237 = sphi 0, %s239
      %s240 = sphi 0, %s237
      %s241 = sphi 0, %s240
      %s257 = sphi 0, %s241
    $region4: #{tpu_custom_call.1} parent=1 // loop_header_branch
      %21 = sbr.rel (%p19) target = $region8
    $region5: #{tpu_custom_call.1} parent=1 // loop_body
      %s23 = ssub.s32 %s18, 1
      %s24 = ssub.s32 %s18, 2
      %s25 = sadd.s32 %s18, 1
      %s26 = ssub.s32 %s18, %s25
      %p27 = scmp.eq.s32.totalorder %s26, 0
      %s29 = sadd.s32 %s28, 1
      %s30 = scalar_select %p27, %s28, %s29
      %p33 = pneg %p27
      %p34 = scmp.eq.s32.totalorder %s18, 3
      %p35 = por %p33, %p34
      %p36 = scmp.ne.s32.totalorder %s28, %s31
      %p37 = scmp.eq.s32.totalorder %s18, 0
      %p38 = por %p36, %p37
      %p39 = scmp.ne.s32.totalorder %s28, %s31
      %p40 = scmp.eq.s32.totalorder %s23, 3
      %p41 = por %p39, %p40
      %p42 = scmp.ne.s32.totalorder %s31, %s32
      %p43 = scmp.eq.s32.totalorder %s23, 0
      %p44 = por %p42, %p43
      %p45 = scmp.ne.s32.totalorder %s31, %s32
      %p46 = scmp.eq.s32.totalorder %s24, 3
      %p47 = por %p45, %p46
      %p49 = scmp.ne.s32.totalorder %s32, %s48
      %p50 = scmp.eq.s32.totalorder %s24, 0
      %p51 = por %p49, %p50
      %s52 = ssub.s32 %s18, %s25
      %p53 = scmp.eq.s32.totalorder %s52, 0
      %s55 = sadd.s32 %s54, 1
      %s56 = scalar_select %p53, %s54, %s55
      %p59 = pneg %p53
      %p60 = scmp.eq.s32.totalorder %s18, 3
      %p61 = por %p59, %p60
      %p62 = scmp.ne.s32.totalorder %s54, %s57
      %p63 = scmp.eq.s32.totalorder %s18, 0
      %p64 = por %p62, %p63
      %p65 = scmp.ne.s32.totalorder %s54, %s57
      %p66 = scmp.eq.s32.totalorder %s23, 3
      %p67 = por %p65, %p66
      %p68 = scmp.ne.s32.totalorder %s57, %s58
      %p69 = scmp.eq.s32.totalorder %s23, 0
      %p70 = por %p68, %p69
      %p71 = scmp.ne.s32.totalorder %s57, %s58
      %p72 = scmp.eq.s32.totalorder %s24, 3
      %p73 = por %p71, %p72
      %p75 = scmp.ne.s32.totalorder %s58, %s74
      %p76 = scmp.eq.s32.totalorder %s24, 0
      %p77 = por %p75, %p76
      %s78 = ssub.s32 %s18, %s25
      %p79 = scmp.eq.s32.totalorder %s78, 0
      %s81 = sadd.s32 %s80, 1
      %s82 = scalar_select %p79, %s80, %s81
      %p85 = pneg %p79
      %p86 = scmp.eq.s32.totalorder %s18, 3
      %p87 = por %p85, %p86
      %p88 = scmp.ne.s32.totalorder %s80, %s83
      %p89 = scmp.eq.s32.totalorder %s18, 0
      %p90 = por %p88, %p89
      %p91 = scmp.ne.s32.totalorder %s80, %s83
      %p92 = scmp.eq.s32.totalorder %s23, 3
      %p93 = por %p91, %p92
      %p94 = scmp.ne.s32.totalorder %s83, %s84
      %p95 = scmp.eq.s32.totalorder %s23, 0
      %p96 = por %p94, %p95
      %p97 = scmp.ne.s32.totalorder %s83, %s84
      %p98 = scmp.eq.s32.totalorder %s24, 3
      %p99 = por %p97, %p98
      %p101 = scmp.ne.s32.totalorder %s84, %s100
      %p102 = scmp.eq.s32.totalorder %s24, 0
      %p103 = por %p101, %p102
      %s105 = sadd.s32 %s104, 1
      %p108 = scmp.eq.s32.totalorder %s18, 3
      %p109 = scmp.ne.s32.totalorder %s104, %s106
      %p110 = scmp.eq.s32.totalorder %s18, 0
      %p111 = por %p109, %p110
      %p112 = scmp.ne.s32.totalorder %s104, %s106
      %p113 = scmp.eq.s32.totalorder %s23, 3
      %p114 = por %p112, %p113
      %p115 = scmp.ne.s32.totalorder %s106, %s107
      %p116 = scmp.eq.s32.totalorder %s23, 0
      %p117 = por %p115, %p116
      %p118 = scmp.ne.s32.totalorder %s106, %s107
      %p119 = scmp.eq.s32.totalorder %s24, 3
      %p120 = por %p118, %p119
      %p122 = scmp.ne.s32.totalorder %s107, %s121
      %p123 = scmp.eq.s32.totalorder %s24, 0
      %p124 = por %p122, %p123
      %s126 = sadd.s32 %s125, 1
      %p129 = scmp.eq.s32.totalorder %s18, 3
      %p130 = scmp.ne.s32.totalorder %s125, %s127
      %p131 = scmp.eq.s32.totalorder %s18, 0
      %p132 = por %p130, %p131
      %p133 = scmp.ne.s32.totalorder %s125, %s127
      %p134 = scmp.eq.s32.totalorder %s23, 3
      %p135 = por %p133, %p134
      %p136 = scmp.ne.s32.totalorder %s127, %s128
      %p137 = scmp.eq.s32.totalorder %s23, 0
      %p138 = por %p136, %p137
      %p139 = scmp.ne.s32.totalorder %s127, %s128
      %p140 = scmp.eq.s32.totalorder %s24, 3
      %p141 = por %p139, %p140
      %p143 = scmp.ne.s32.totalorder %s128, %s142
      %p144 = scmp.eq.s32.totalorder %s24, 0
      %p145 = por %p143, %p144
      %s146 = ssub.s32 %s18, %s25
      %p147 = scmp.eq.s32.totalorder %s146, 0
      %s149 = sadd.s32 %s148, 1
      %s150 = scalar_select %p147, %s148, %s149
      %p153 = pneg %p147
      %p154 = scmp.eq.s32.totalorder %s18, 3
      %p155 = por %p153, %p154
      %p156 = scmp.ne.s32.totalorder %s148, %s151
      %p157 = scmp.eq.s32.totalorder %s18, 0
      %p158 = por %p156, %p157
      %p159 = scmp.ne.s32.totalorder %s148, %s151
      %p160 = scmp.eq.s32.totalorder %s23, 3
      %p161 = por %p159, %p160
      %p162 = scmp.ne.s32.totalorder %s151, %s152
      %p163 = scmp.eq.s32.totalorder %s23, 0
      %p164 = por %p162, %p163
      %p165 = scmp.ne.s32.totalorder %s151, %s152
      %p166 = scmp.eq.s32.totalorder %s24, 3
      %p167 = por %p165, %p166
      %p169 = scmp.ne.s32.totalorder %s152, %s168
      %p170 = scmp.eq.s32.totalorder %s24, 0
      %p171 = por %p169, %p170
      %s173 = sadd.s32 %s172, 1
      %p176 = scmp.eq.s32.totalorder %s18, 3
      %p177 = scmp.ne.s32.totalorder %s172, %s174
      %p178 = scmp.eq.s32.totalorder %s18, 0
      %p179 = por %p177, %p178
      %p180 = scmp.ne.s32.totalorder %s172, %s174
      %p181 = scmp.eq.s32.totalorder %s23, 3
      %p182 = por %p180, %p181
      %p183 = scmp.ne.s32.totalorder %s174, %s175
      %p184 = scmp.eq.s32.totalorder %s23, 0
      %p185 = por %p183, %p184
      %p186 = scmp.ne.s32.totalorder %s174, %s175
      %p187 = scmp.eq.s32.totalorder %s24, 3
      %p188 = por %p186, %p187
      %p190 = scmp.ne.s32.totalorder %s175, %s189
      %p191 = scmp.eq.s32.totalorder %s24, 0
      %p192 = por %p190, %p191
      %s194 = sadd.s32 %s193, 1
      %p197 = scmp.eq.s32.totalorder %s18, 3
      %p198 = scmp.ne.s32.totalorder %s193, %s195
      %p199 = scmp.eq.s32.totalorder %s18, 0
      %p200 = por %p198, %p199
      %p201 = scmp.ne.s32.totalorder %s193, %s195
      %p202 = scmp.eq.s32.totalorder %s23, 3
      %p203 = por %p201, %p202
      %p204 = scmp.ne.s32.totalorder %s195, %s196
      %p205 = scmp.eq.s32.totalorder %s23, 0
      %p206 = por %p204, %p205
      %p207 = scmp.ne.s32.totalorder %s195, %s196
      %p208 = scmp.eq.s32.totalorder %s24, 3
      %p209 = por %p207, %p208
      %p211 = scmp.ne.s32.totalorder %s196, %s210
      %p212 = scmp.eq.s32.totalorder %s24, 0
      %p213 = por %p211, %p212
      %s215 = sadd.s32 %s214, 1
      %p218 = scmp.eq.s32.totalorder %s18, 3
      %p219 = scmp.ne.s32.totalorder %s214, %s216
      %p220 = scmp.eq.s32.totalorder %s18, 0
      %p221 = por %p219, %p220
      %p222 = scmp.ne.s32.totalorder %s214, %s216
      %p223 = scmp.eq.s32.totalorder %s23, 3
      %p224 = por %p222, %p223
      %p225 = scmp.ne.s32.totalorder %s216, %s217
      %p226 = scmp.eq.s32.totalorder %s23, 0
      %p227 = por %p225, %p226
      %p228 = scmp.ne.s32.totalorder %s216, %s217
      %p229 = scmp.eq.s32.totalorder %s24, 3
      %p230 = por %p228, %p229
      %p232 = scmp.ne.s32.totalorder %s217, %s231
      %p233 = scmp.eq.s32.totalorder %s24, 0
      %p234 = por %p232, %p233
      %s235 = ssub.s32 %s18, %s25
      %p236 = scmp.eq.s32.totalorder %s235, 0
      %s238 = sadd.s32 %s237, 1
      %s239 = scalar_select %p236, %s237, %s238
      %p242 = pneg %p236
      %p243 = scmp.eq.s32.totalorder %s18, 3
      %p244 = por %p242, %p243
      %p245 = scmp.ne.s32.totalorder %s237, %s240
      %p246 = scmp.eq.s32.totalorder %s18, 0
      %p247 = por %p245, %p246
      %p248 = scmp.ne.s32.totalorder %s237, %s240
      %p249 = scmp.eq.s32.totalorder %s23, 3
      %p250 = por %p248, %p249
      %p251 = scmp.ne.s32.totalorder %s240, %s241
      %p252 = scmp.eq.s32.totalorder %s23, 0
      %p253 = por %p251, %p252
      %p254 = scmp.ne.s32.totalorder %s240, %s241
      %p255 = scmp.eq.s32.totalorder %s24, 3
      %p256 = por %p254, %p255
      %p258 = scmp.ne.s32.totalorder %s241, %s257
      %p259 = scmp.eq.s32.totalorder %s24, 0
      %p260 = por %p258, %p259
      %p261 = scmp.le.s32.totalorder 1, %s18
      %p262 = scmp.lt.s32.totalorder %s18, 5
      %p263 = pnand %p261, %p262
      %p264 = pneg %p263
      // Predicated region
      $region9: #{tpu_custom_call.1} parent=5 // pred_check
        _
      $region10: #{tpu_custom_call.1} parent=5 // pred_check_branch
        %266 = sbr.rel (%p263) target = $region12
      $region11: #{tpu_custom_call.1} parent=5 // pred_region
        %s267 = ssub.s32 %s18, 1
        // Predicated region
        $region13: #{tpu_custom_call.1} parent=11 // pred_check
          %p268 = pneg %p117
        $region14: #{tpu_custom_call.1} parent=11 // pred_check_branch
          %270 = sbr.rel (%p268) target = $region16
        $region15: #{tpu_custom_call.1} parent=11 // pred_region
          _
        $region16: #{tpu_custom_call.1} parent=11 // pred_fallthru
          _
        // Predicated region
        $region17: #{tpu_custom_call.1} parent=11 // pred_check
          %p271 = pneg %p138
        $region18: #{tpu_custom_call.1} parent=11 // pred_check_branch
          %273 = sbr.rel (%p271) target = $region20
        $region19: #{tpu_custom_call.1} parent=11 // pred_region
          _
        $region20: #{tpu_custom_call.1} parent=11 // pred_fallthru
          _
        // Predicated region
        $region21: #{tpu_custom_call.1} parent=11 // pred_check
          %p274 = pneg %p185
        $region22: #{tpu_custom_call.1} parent=11 // pred_check_branch
          %276 = sbr.rel (%p274) target = $region24
        $region23: #{tpu_custom_call.1} parent=11 // pred_region
          _
        $region24: #{tpu_custom_call.1} parent=11 // pred_fallthru
          _
        // Predicated region
        $region25: #{tpu_custom_call.1} parent=11 // pred_check
          %p277 = pneg %p206
        $region26: #{tpu_custom_call.1} parent=11 // pred_check_branch
          %279 = sbr.rel (%p277) target = $region28
        $region27: #{tpu_custom_call.1} parent=11 // pred_region
          _
        $region28: #{tpu_custom_call.1} parent=11 // pred_fallthru
          _
        // Predicated region
        $region29: #{tpu_custom_call.1} parent=11 // pred_check
          %p280 = pneg %p227
        $region30: #{tpu_custom_call.1} parent=11 // pred_check_branch
          %282 = sbr.rel (%p280) target = $region32
        $region31: #{tpu_custom_call.1} parent=11 // pred_region
          _
        $region32: #{tpu_custom_call.1} parent=11 // pred_fallthru
          _
      $region12: #{tpu_custom_call.1} parent=5 // pred_fallthru
        _
      %p283 = scmp.lt.s32.totalorder %s18, 4
      // Predicated region
      $region33: #{tpu_custom_call.1} parent=5 // pred_check
        %p284 = pneg %p283
      $region34: #{tpu_custom_call.1} parent=5 // pred_check_branch
        %286 = sbr.rel (%p284) target = $region36
      $region35: #{tpu_custom_call.1} parent=5 // pred_region
        // Predicated region
        $region37: #{tpu_custom_call.1} parent=35 // pred_check
          %p287 = pneg %p38
        $region38: #{tpu_custom_call.1} parent=35 // pred_check_branch
          %289 = sbr.rel (%p287) target = $region40
        $region39: #{tpu_custom_call.1} parent=35 // pred_region
          %p290 = scmp.lt.s32.totalorder %s18, 3
          %s291 = scalar_select %p290, %s18, 3
          %s292 = smul.addr %s291, 2
          %s293 = smul.addr %s292, 2
          %s294 = scalar_lea.vmem %s0, %s293
        $region40: #{tpu_custom_call.1} parent=35 // pred_fallthru
          _
        // Predicated region
        $region41: #{tpu_custom_call.1} parent=35 // pred_check
          %p295 = pneg %p64
        $region42: #{tpu_custom_call.1} parent=35 // pred_check_branch
          %297 = sbr.rel (%p295) target = $region44
        $region43: #{tpu_custom_call.1} parent=35 // pred_region
          %p298 = scmp.lt.s32.totalorder %s18, 3
          %s299 = scalar_select %p298, %s18, 3
          %s300 = smul.addr %s299, 2
          %s301 = scalar_lea.vmem %s1, %s300
        $region44: #{tpu_custom_call.1} parent=35 // pred_fallthru
          _
        // Predicated region
        $region45: #{tpu_custom_call.1} parent=35 // pred_check
          %p302 = pneg %p90
        $region46: #{tpu_custom_call.1} parent=35 // pred_check_branch
          %304 = sbr.rel (%p302) target = $region48
        $region47: #{tpu_custom_call.1} parent=35 // pred_region
          %p305 = scmp.lt.s32.totalorder %s18, 3
          %s306 = scalar_select %p305, %s18, 3
          %s307 = smul.addr %s306, 2
          %s308 = scalar_lea.vmem %s2, %s307
        $region48: #{tpu_custom_call.1} parent=35 // pred_fallthru
          _
        // Predicated region
        $region49: #{tpu_custom_call.1} parent=35 // pred_check
          %p309 = pneg %p158
        $region50: #{tpu_custom_call.1} parent=35 // pred_check_branch
          %311 = sbr.rel (%p309) target = $region52
        $region51: #{tpu_custom_call.1} parent=35 // pred_region
          %p312 = scmp.lt.s32.totalorder %s18, 3
          %s313 = scalar_select %p312, %s18, 3
          %s314 = smul.addr %s313, 2
          %s315 = smul.addr %s314, 8
          %s316 = scalar_lea.vmem %s5, %s315
        $region52: #{tpu_custom_call.1} parent=35 // pred_fallthru
          _
      $region36: #{tpu_custom_call.1} parent=5 // pred_fallthru
        _
      %p317 = scmp.le.s32.totalorder 1, %s18
      %p318 = scmp.lt.s32.totalorder %s18, 5
      %p319 = pnand %p317, %p318
      %p320 = pneg %p319
      // Predicated region
      $region53: #{tpu_custom_call.1} parent=5 // pred_check
        _
      $region54: #{tpu_custom_call.1} parent=5 // pred_check_branch
        %322 = sbr.rel (%p319) target = $region56
      $region55: #{tpu_custom_call.1} parent=5 // pred_region
        %s323 = ssub.s32 %s18, 1
        %p324 = scmp.lt.s32.totalorder %s23, 3
        %s325 = scalar_select %p324, %s23, 3
        %s326 = smul.addr %s325, 2
        %s327 = smul.addr %s326, 2
        %s328 = scalar_lea.vmem %s0, %s327
        %p329 = pneg %p44
        %p330 = pneg %p41
        %p331 = scmp.lt.s32.totalorder %s23, 3
        %s332 = scalar_select %p331, %s23, 3
        %s333 = smul.addr %s332, 2
        %s334 = scalar_lea.vmem %s1, %s333
        %p335 = pneg %p70
        %p336 = pneg %p67
        %p337 = scmp.lt.s32.totalorder %s23, 3
        %s338 = scalar_select %p337, %s23, 3
        %s339 = smul.addr %s338, 2
        %s340 = scalar_lea.vmem %s2, %s339
        %p341 = pneg %p96
        %p342 = pneg %p93
        %p343 = pneg %p117
        %p344 = pneg %p114
        %p345 = pneg %p138
        %p346 = pneg %p135
        %p347 = scmp.lt.s32.totalorder %s23, 3
        %s348 = scalar_select %p347, %s23, 3
        %s349 = smul.addr %s348, 2
        %s350 = smul.addr %s349, 8
        %s351 = scalar_lea.vmem %s5, %s350
        %p352 = pneg %p164
        %p353 = pneg %p161
        %p354 = pneg %p185
        %p355 = pneg %p182
        %p356 = pneg %p206
        %p357 = pneg %p203
        %p358 = pneg %p227
        %p359 = pneg %p224
        %p360 = pneg %p253
        %p361 = pneg %p250
        %s362 = sand.u32 %s240, 1
        %s363 = scalar_lea.sflag [#allocation3], %s362
        %s364 = sand.u32 %s240, 1
        %s365 = smul.addr %s364, 2
        %s366 = scalar_lea.vmem [#allocation2], %s365
        %p367 = scmp.lt.s32.totalorder %s23, 3
        %s368 = scalar_select %p367, %s23, 3
        %s369 = smul.addr %s368, 2
        %s370 = smul.addr %s369, 2
        %s371 = scalar_lea.vmem %s0, %s370
        %p372 = scmp.lt.s32.totalorder %s23, 3
        %s373 = scalar_select %p372, %s23, 3
        %s374 = smul.addr %s373, 2
        %s375 = scalar_lea.vmem %s1, %s374
        %p376 = scmp.lt.s32.totalorder %s23, 3
        %s377 = scalar_select %p376, %s23, 3
        %s378 = smul.addr %s377, 2
        %s379 = scalar_lea.vmem %s2, %s378
        %p380 = scmp.lt.s32.totalorder %s23, 3
        %s381 = scalar_select %p380, %s23, 3
        %s382 = smul.addr %s381, 2
        %s383 = smul.addr %s382, 8
        %s384 = scalar_lea.vmem %s5, %s383
        %v385 = vld [vmem:[%s371] sm:$0xf]
        %v386 = vld [vmem:[%s375] sm:$0x3]
        %v387 = vld [vmem:[%s379] sm:$0x3]
        %v388 = vld [vmem:[%s3] sm:$0xff]
        %v389 = vld [vmem:[%s3 + $0x8] sm:$0xff]
        %v390 = vld [vmem:[%s3 + $0x10] sm:$0xff]
        %v391 = vld [vmem:[%s3 + $0x18] sm:$0xff]
        %v392 = vld [vmem:[%s3 + $0x20] sm:$0xff]
        %v393 = vld [vmem:[%s3 + $0x28] sm:$0xff]
        %v394 = vld [vmem:[%s3 + $0x30] sm:$0xff]
        %v395 = vld [vmem:[%s3 + $0x38] sm:$0xff]
        %v396 = vld [vmem:[%s3 + $0x40] sm:$0xff]
        %v397 = vld [vmem:[%s3 + $0x48] sm:$0xff]
        %v398 = vld [vmem:[%s3 + $0x50] sm:$0xff]
        %v399 = vld [vmem:[%s3 + $0x58] sm:$0xff]
        %v400 = vld [vmem:[%s3 + $0x60] sm:$0xff]
        %v401 = vld [vmem:[%s3 + $0x68] sm:$0xff]
        %v402 = vld [vmem:[%s3 + $0x70] sm:$0xff]
        %v403 = vld [vmem:[%s3 + $0x78] sm:$0xff]
        %v404 = vld [vmem:[%s3 + $0x80] sm:$0xff]
        %v405 = vld [vmem:[%s3 + $0x88] sm:$0xff]
        %v406 = vld [vmem:[%s3 + $0x90] sm:$0xff]
        %v407 = vld [vmem:[%s3 + $0x98] sm:$0xff]
        %v408 = vld [vmem:[%s3 + $0xa0] sm:$0xff]
        %v409 = vld [vmem:[%s3 + $0xa8] sm:$0xff]
        %v410 = vld [vmem:[%s3 + $0xb0] sm:$0xff]
        %v411 = vld [vmem:[%s3 + $0xb8] sm:$0xff]
        %v412 = vld [vmem:[%s3 + $0xc0] sm:$0xff]
        %v413 = vld [vmem:[%s3 + $0xc8] sm:$0xff]
        %v414 = vld [vmem:[%s3 + $0xd0] sm:$0xff]
        %v415 = vld [vmem:[%s3 + $0xd8] sm:$0xff]
        %v416 = vld [vmem:[%s3 + $0xe0] sm:$0xff]
        %v417 = vld [vmem:[%s3 + $0xe8] sm:$0xff]
        %v418 = vld [vmem:[%s3 + $0xf0] sm:$0xff]
        %v419 = vld [vmem:[%s3 + $0xf8] sm:$0xff]
        %v420 = vld [vmem:[%s4] sm:$0x1]
        %v422 = vlaneseq
        %v423 = vshrl.u32 %v422, 7
        %v424 = vsub.s32 0, %v423
        %v425 = vrot.slane %v420, %v424
        %v429 = vunpack.c.l.s4 1983009808
        %v430 = vunpack.c.0.s8 %v429
        %v431 = vlaneseq
        %v432 = vshrl.u32 %v431, 7
        %v433 = vsub.s32 %v430, %v432
        %v434 = vrot.slane %v385, %v433
        %v435 = vcombine.high %v434, %v434
        %438 = vmatprep.subr.mxu0 0.0
        %439 = vmatpush1.msra.mxu0 %v403
        %440 = vmatprep.subr.mxu0 0.0
        %441 = vmatpush1.msra.mxu0 %v402
        %442 = vmatprep.subr.mxu0 0.0
        %443 = vmatpush1.msra.mxu0 %v401
        %444 = vmatprep.subr.mxu0 0.0
        %445 = vmatpush1.msra.mxu0 %v400
        %446 = vmatprep.subr.mxu0 0.0
        %447 = vmatpush1.msra.mxu0 %v399
        %448 = vmatprep.subr.mxu0 0.0
        %449 = vmatpush1.msra.mxu0 %v398
        %450 = vmatprep.subr.mxu0 0.0
        %451 = vmatpush1.msra.mxu0 %v397
        %452 = vmatprep.subr.mxu0 0.0
        %453 = vmatpush1.msra.mxu0 %v396
        %454 = vmatprep.subr.mxu0 0.0
        %455 = vmatpush1.msra.mxu0 %v395
        %456 = vmatprep.subr.mxu0 0.0
        %457 = vmatpush1.msra.mxu0 %v394
        %458 = vmatprep.subr.mxu0 0.0
        %459 = vmatpush1.msra.mxu0 %v393
        %460 = vmatprep.subr.mxu0 0.0
        %461 = vmatpush1.msra.mxu0 %v392
        %462 = vmatprep.subr.mxu0 0.0
        %463 = vmatpush1.msra.mxu0 %v391
        %464 = vmatprep.subr.mxu0 0.0
        %465 = vmatpush1.msra.mxu0 %v390
        %466 = vmatprep.subr.mxu0 0.0
        %467 = vmatpush1.msra.mxu0 %v389
        %468 = vmatprep.subr.mxu0 0.0
        %469 = vmatpush1.msra.mxu0 %v388
        %470 = vmatprep.subr.mxu0 0.0
        %471 = vmatpush2.msra.mxu0 %v419
        %472 = vmatprep.subr.mxu0 0.0
        %473 = vmatpush2.msra.mxu0 %v418
        %474 = vmatprep.subr.mxu0 0.0
        %475 = vmatpush2.msra.mxu0 %v417
        %476 = vmatprep.subr.mxu0 0.0
        %477 = vmatpush2.msra.mxu0 %v416
        %478 = vmatprep.subr.mxu0 0.0
        %479 = vmatpush2.msra.mxu0 %v415
        %480 = vmatprep.subr.mxu0 0.0
        %481 = vmatpush2.msra.mxu0 %v414
        %482 = vmatprep.subr.mxu0 0.0
        %483 = vmatpush2.msra.mxu0 %v413
        %484 = vmatprep.subr.mxu0 0.0
        %485 = vmatpush2.msra.mxu0 %v412
        %486 = vmatprep.subr.mxu0 0.0
        %487 = vmatpush2.msra.mxu0 %v411
        %488 = vmatprep.subr.mxu0 0.0
        %489 = vmatpush2.msra.mxu0 %v410
        %490 = vmatprep.subr.mxu0 0.0
        %491 = vmatpush2.msra.mxu0 %v409
        %492 = vmatprep.subr.mxu0 0.0
        %493 = vmatpush2.msra.mxu0 %v408
        %494 = vmatprep.subr.mxu0 0.0
        %495 = vmatpush2.msra.mxu0 %v407
        %496 = vmatprep.subr.mxu0 0.0
        %497 = vmatpush2.msra.mxu0 %v406
        %498 = vmatprep.subr.mxu0 0.0
        %499 = vmatpush2.msra.mxu0 %v405
        %500 = vmatprep.subr.mxu0 0.0
        %501 = vmatpush2.msra.mxu0 %v404
        %502 = vmatprep.mubr.f32.mxu0 %v435
        %503 = vmatmul.mubr.f32.gmra.mxu0 %v434
        %v504 = vpop.f32.mrf.mxu0
        %v505 = vadd.f32 %v425, %v504
        %v506 = vpop.f32.mrf.mxu0
        %507 = vdwg.mxu0
        %vm508 = vcmask 58368
        %v509 = vsel %vm508, %v505, -inf
        %510 = vmax.xlane.f32.xlu0 %v509
        %v511 = vpop.xlane.xlu0 %510
        %v512 = vsub.f32 %v505, %v511
        %v513 = vmul.f32 %v512, 1.442695
        %v514 = vpow.pop %v513
        %vm515 = vcmask 123968
        %v516 = vsel %vm515, %v505, -inf
        %517 = vmax.xlane.f32.xlu0 %v516
        %v518 = vpop.xlane.xlu0 %517
        %v519 = vsub.f32 %v505, %v518
        %v520 = vmul.f32 %v519, 1.442695
        %v521 = vpow.pop %v520
        %v522 = vsel %vm508, %v514, 0.0
        %523 = vadd.xlane.f32.xlu0 %v522
        %v524 = vpop.xlane.xlu0 %523
        %v525 = vrcp.pop %v524
        %v526 = vmul.f32 %v514, %v525
        %528 = vrot.lane.b32.xlu0 %v521, 120
        %v529 = vpop.permute.xlu0 %528
        %v531 = vsel %vm508, %v529, 0.0
        %532 = vadd.xlane.f32.xlu0 %v531
        %v533 = vpop.xlane.xlu0 %532
        %v534 = vrcp.pop %v533
        %v535 = vmul.f32 %v521, %v534
        %vm536 = vcmask 64512
        %v537 = vsel %vm536, %v526, %v535
        %v538 = vld [vmem:[%s384] sm:$0xff]
        %v539 = vld [vmem:[%s384 + $0x8] sm:$0xff]
        %vm540 = vcmask 130048
        %v542 = vsel %vm540, %v537, 0
        %544 = vmatprep.subr.mxu0 0.0
        %545 = vmatpush1.msra.mxu0 0.0
        %546 = vmatprep.subr.mxu0 0.0
        %547 = vmatpush1.msra.mxu0 0.0
        %548 = vmatprep.subr.mxu0 0.0
        %549 = vmatpush1.msra.mxu0 0.0
        %550 = vmatprep.subr.mxu0 0.0
        %551 = vmatpush1.msra.mxu0 0.0
        %552 = vmatprep.subr.mxu0 0.0
        %553 = vmatpush1.msra.mxu0 0.0
        %554 = vmatprep.subr.mxu0 0.0
        %555 = vmatpush1.msra.mxu0 0.0
        %556 = vmatprep.subr.mxu0 0.0
        %557 = vmatpush1.msra.mxu0 0.0
        %558 = vmatprep.subr.mxu0 0.0
        %559 = vmatpush1.msra.mxu0 0.0
        %560 = vmatprep.subr.mxu0 0.0
        %561 = vmatpush1.msra.mxu0 0.0
        %562 = vmatprep.subr.mxu0 0.0
        %563 = vmatpush1.msra.mxu0 0.0
        %564 = vmatprep.subr.mxu0 0.0
        %565 = vmatpush1.msra.mxu0 0.0
        %566 = vmatprep.subr.mxu0 0.0
        %567 = vmatpush1.msra.mxu0 0.0
        %568 = vmatprep.subr.mxu0 0.0
        %569 = vmatpush1.msra.mxu0 0.0
        %570 = vmatprep.subr.mxu0 0.0
        %571 = vmatpush1.msra.mxu0 0.0
        %572 = vmatprep.subr.mxu0 0.0
        %573 = vmatpush1.msra.mxu0 %v539
        %574 = vmatprep.subr.mxu0 0.0
        %575 = vmatpush1.msra.mxu0 %v538
        %576 = vmatprep.subr.mxu0 0.0
        %577 = vmatpush2.msra.mxu0 0.0
        %578 = vmatprep.subr.mxu0 0.0
        %579 = vmatpush2.msra.mxu0 0.0
        %580 = vmatprep.subr.mxu0 0.0
        %581 = vmatpush2.msra.mxu0 0.0
        %582 = vmatprep.subr.mxu0 0.0
        %583 = vmatpush2.msra.mxu0 0.0
        %584 = vmatprep.subr.mxu0 0.0
        %585 = vmatpush2.msra.mxu0 0.0
        %586 = vmatprep.subr.mxu0 0.0
        %587 = vmatpush2.msra.mxu0 0.0
        %588 = vmatprep.subr.mxu0 0.0
        %589 = vmatpush2.msra.mxu0 0.0
        %590 = vmatprep.subr.mxu0 0.0
        %591 = vmatpush2.msra.mxu0 0.0
        %592 = vmatprep.subr.mxu0 0.0
        %593 = vmatpush2.msra.mxu0 0.0
        %594 = vmatprep.subr.mxu0 0.0
        %595 = vmatpush2.msra.mxu0 0.0
        %596 = vmatprep.subr.mxu0 0.0
        %597 = vmatpush2.msra.mxu0 0.0
        %598 = vmatprep.subr.mxu0 0.0
        %599 = vmatpush2.msra.mxu0 0.0
        %600 = vmatprep.subr.mxu0 0.0
        %601 = vmatpush2.msra.mxu0 0.0
        %602 = vmatprep.subr.mxu0 0.0
        %603 = vmatpush2.msra.mxu0 0.0
        %604 = vmatprep.subr.mxu0 0.0
        %605 = vmatpush2.msra.mxu0 0.0
        %606 = vmatprep.subr.mxu0 0.0
        %607 = vmatpush2.msra.mxu0 0.0
        %608 = vmatprep.mubr.f32.mxu0 0.0
        %609 = vmatmul.mubr.f32.gmra.mxu0 %v542
        %v610 = vpop.f32.mrf.mxu0
        %v611 = vadd.f32 0.0, %v610
        %v612 = vpop.f32.mrf.mxu0
        %613 = vdwg.mxu0
        %v614 = vld [vmem:[%s6] sm:$0xff]
        %v615 = vld [vmem:[%s6 + $0x8] sm:$0xff]
        %v616 = vld [vmem:[%s6 + $0x10] sm:$0xff]
        %v617 = vld [vmem:[%s6 + $0x18] sm:$0xff]
        %v618 = vld [vmem:[%s6 + $0x20] sm:$0xf]
        %v619 = vld [vmem:[%s7] sm:$0x1]
        %v621 = vlaneseq
        %v622 = vshrl.u32 %v621, 7
        %v623 = vsub.s32 0, %v622
        %v624 = vrot.slane %v619, %v623
        %vm626 = vcmask 293888
        %v628 = vsel %vm626, %v386, 0
        %vm630 = vcmask 1043456
        %v632 = vsel %vm630, %v618, 0
        %634 = vmatprep.subr.mxu0 0.0
        %635 = vmatpush1.msra.mxu0 0.0
        %636 = vmatprep.subr.mxu0 0.0
        %637 = vmatpush1.msra.mxu0 0.0
        %638 = vmatprep.subr.mxu0 0.0
        %639 = vmatpush1.msra.mxu0 0.0
        %640 = vmatprep.subr.mxu0 0.0
        %641 = vmatpush1.msra.mxu0 0.0
        %642 = vmatprep.subr.mxu0 0.0
        %643 = vmatpush1.msra.mxu0 0.0
        %644 = vmatprep.subr.mxu0 0.0
        %645 = vmatpush1.msra.mxu0 0.0
        %646 = vmatprep.subr.mxu0 0.0
        %647 = vmatpush1.msra.mxu0 0.0
        %648 = vmatprep.subr.mxu0 0.0
        %649 = vmatpush1.msra.mxu0 0.0
        %650 = vmatprep.subr.mxu0 0.0
        %651 = vmatpush1.msra.mxu0 0.0
        %652 = vmatprep.subr.mxu0 0.0
        %653 = vmatpush1.msra.mxu0 0.0
        %654 = vmatprep.subr.mxu0 0.0
        %655 = vmatpush1.msra.mxu0 0.0
        %656 = vmatprep.subr.mxu0 0.0
        %657 = vmatpush1.msra.mxu0 %v632
        %658 = vmatprep.subr.mxu0 0.0
        %659 = vmatpush1.msra.mxu0 %v617
        %660 = vmatprep.subr.mxu0 0.0
        %661 = vmatpush1.msra.mxu0 %v616
        %662 = vmatprep.subr.mxu0 0.0
        %663 = vmatpush1.msra.mxu0 %v615
        %664 = vmatprep.subr.mxu0 0.0
        %665 = vmatpush1.msra.mxu0 %v614
        %666 = vmatprep.subr.mxu0 0.0
        %667 = vmatpush2.msra.mxu0 0.0
        %668 = vmatprep.subr.mxu0 0.0
        %669 = vmatpush2.msra.mxu0 0.0
        %670 = vmatprep.subr.mxu0 0.0
        %671 = vmatpush2.msra.mxu0 0.0
        %672 = vmatprep.subr.mxu0 0.0
        %673 = vmatpush2.msra.mxu0 0.0
        %674 = vmatprep.subr.mxu0 0.0
        %675 = vmatpush2.msra.mxu0 0.0
        %676 = vmatprep.subr.mxu0 0.0
        %677 = vmatpush2.msra.mxu0 0.0
        %678 = vmatprep.subr.mxu0 0.0
        %679 = vmatpush2.msra.mxu0 0.0
        %680 = vmatprep.subr.mxu0 0.0
        %681 = vmatpush2.msra.mxu0 0.0
        %682 = vmatprep.subr.mxu0 0.0
        %683 = vmatpush2.msra.mxu0 0.0
        %684 = vmatprep.subr.mxu0 0.0
        %685 = vmatpush2.msra.mxu0 0.0
        %686 = vmatprep.subr.mxu0 0.0
        %687 = vmatpush2.msra.mxu0 0.0
        %688 = vmatprep.subr.mxu0 0.0
        %689 = vmatpush2.msra.mxu0 0.0
        %690 = vmatprep.subr.mxu0 0.0
        %691 = vmatpush2.msra.mxu0 0.0
        %692 = vmatprep.subr.mxu0 0.0
        %693 = vmatpush2.msra.mxu0 0.0
        %694 = vmatprep.subr.mxu0 0.0
        %695 = vmatpush2.msra.mxu0 0.0
        %696 = vmatprep.subr.mxu0 0.0
        %697 = vmatpush2.msra.mxu0 0.0
        %698 = vmatprep.mubr.f32.mxu0 0.0
        %699 = vmatmul.mubr.f32.gmra.mxu0 %v628
        %v700 = vpop.f32.mrf.mxu0
        %v701 = vadd.f32 %v624, %v700
        %v702 = vpop.f32.mrf.mxu0
        %703 = vdwg.mxu0
        %v704 = vxor.u32 %v701, 2147483648
        %v705 = vmul.f32 %v704, 1.442695
        %v706 = vpow.pop %v705
        %v707 = vadd.f32 %v706, 1.0
        %v708 = vrcp.pop %v707
        %v709 = vmul.f32 1.0, %v708
        %711 = vrot.lane.b32.xlu0 %v387, 32
        %v712 = vpop.permute.xlu0 %711
        %v714 = vmul.f32 %v709, %v712
        %v715 = vld [vmem:[%s8] sm:$0xff]
        %v716 = vld [vmem:[%s8 + $0x8] sm:$0xff]
        %v717 = vld [vmem:[%s8 + $0x10] sm:$0xff]
        %v718 = vld [vmem:[%s8 + $0x18] sm:$0xff]
        %720 = vrot.lane.b32.xlu0 %v714, 96
        %v721 = vpop.permute.xlu0 %720
        %vm722 = vcmask 261120
        %v723 = vsel %vm722, %v721, 0
        %725 = vmatprep.subr.mxu0 0.0
        %726 = vmatpush1.msra.mxu0 0.0
        %727 = vmatprep.subr.mxu0 0.0
        %728 = vmatpush1.msra.mxu0 0.0
        %729 = vmatprep.subr.mxu0 0.0
        %730 = vmatpush1.msra.mxu0 0.0
        %731 = vmatprep.subr.mxu0 0.0
        %732 = vmatpush1.msra.mxu0 0.0
        %733 = vmatprep.subr.mxu0 0.0
        %734 = vmatpush1.msra.mxu0 0.0
        %735 = vmatprep.subr.mxu0 0.0
        %736 = vmatpush1.msra.mxu0 0.0
        %737 = vmatprep.subr.mxu0 0.0
        %738 = vmatpush1.msra.mxu0 0.0
        %739 = vmatprep.subr.mxu0 0.0
        %740 = vmatpush1.msra.mxu0 0.0
        %741 = vmatprep.subr.mxu0 0.0
        %742 = vmatpush1.msra.mxu0 0.0
        %743 = vmatprep.subr.mxu0 0.0
        %744 = vmatpush1.msra.mxu0 0.0
        %745 = vmatprep.subr.mxu0 0.0
        %746 = vmatpush1.msra.mxu0 0.0
        %747 = vmatprep.subr.mxu0 0.0
        %748 = vmatpush1.msra.mxu0 0.0
        %749 = vmatprep.subr.mxu0 0.0
        %750 = vmatpush1.msra.mxu0 %v718
        %751 = vmatprep.subr.mxu0 0.0
        %752 = vmatpush1.msra.mxu0 %v717
        %753 = vmatprep.subr.mxu0 0.0
        %754 = vmatpush1.msra.mxu0 %v716
        %755 = vmatprep.subr.mxu0 0.0
        %756 = vmatpush1.msra.mxu0 %v715
        %757 = vmatprep.subr.mxu0 0.0
        %758 = vmatpush2.msra.mxu0 0.0
        %759 = vmatprep.subr.mxu0 0.0
        %760 = vmatpush2.msra.mxu0 0.0
        %761 = vmatprep.subr.mxu0 0.0
        %762 = vmatpush2.msra.mxu0 0.0
        %763 = vmatprep.subr.mxu0 0.0
        %764 = vmatpush2.msra.mxu0 0.0
        %765 = vmatprep.subr.mxu0 0.0
        %766 = vmatpush2.msra.mxu0 0.0
        %767 = vmatprep.subr.mxu0 0.0
        %768 = vmatpush2.msra.mxu0 0.0
        %769 = vmatprep.subr.mxu0 0.0
        %770 = vmatpush2.msra.mxu0 0.0
        %771 = vmatprep.subr.mxu0 0.0
        %772 = vmatpush2.msra.mxu0 0.0
        %773 = vmatprep.subr.mxu0 0.0
        %774 = vmatpush2.msra.mxu0 0.0
        %775 = vmatprep.subr.mxu0 0.0
        %776 = vmatpush2.msra.mxu0 0.0
        %777 = vmatprep.subr.mxu0 0.0
        %778 = vmatpush2.msra.mxu0 0.0
        %779 = vmatprep.subr.mxu0 0.0
        %780 = vmatpush2.msra.mxu0 0.0
        %781 = vmatprep.subr.mxu0 0.0
        %782 = vmatpush2.msra.mxu0 0.0
        %783 = vmatprep.subr.mxu0 0.0
        %784 = vmatpush2.msra.mxu0 0.0
        %785 = vmatprep.subr.mxu0 0.0
        %786 = vmatpush2.msra.mxu0 0.0
        %787 = vmatprep.subr.mxu0 0.0
        %788 = vmatpush2.msra.mxu0 0.0
        %789 = vmatprep.mubr.f32.mxu0 0.0
        %790 = vmatmul.mubr.f32.gmra.mxu0 %v723
        %v791 = vpop.f32.mrf.mxu0
        %v792 = vadd.f32 0.0, %v791
        %v793 = vpop.f32.mrf.mxu0
        %794 = vdwg.mxu0
        %796 = vrot.lane.b32.xlu0 %v792, 64
        %v797 = vpop.permute.xlu0 %796
        %v799 = vadd.f32 %v701, %v797
        %801 = vrot.lane.b32.xlu0 %v611, 64
        %v802 = vpop.permute.xlu0 %801
        %v804 = vadd.f32 %v799, %v802
        %v805 = vtanh.pop %v804
        %v806 = vsub.f32 1.0, %v709
        %v807 = vmul.f32 %v806, %v387
        %809 = vrot.lane.b32.xlu0 %v805, 64
        %v810 = vpop.permute.xlu0 %809
        %v812 = vmul.f32 %v709, %v810
        %v813 = vadd.f32 %v807, %v812
        %vm814 = vcmask 254976
        %815 = vst.msk [vmem:[%s366] sm:$0x3] %vm814, %v813
        %s816 = sand.u32 %s240, 1
        %s817 = scalar_lea.sflag [#allocation3], %s816
        %s818 = sand.u32 %s240, 1
        %s819 = smul.addr %s818, 2
        %s820 = scalar_lea.vmem [#allocation2], %s819
        // Predicated region
        $region57: #{tpu_custom_call.1} parent=55 // pred_check
          %p821 = pneg %p250
        $region58: #{tpu_custom_call.1} parent=55 // pred_check_branch
          %823 = sbr.rel (%p821) target = $region60
        $region59: #{tpu_custom_call.1} parent=55 // pred_region
          %s825 = ssub.s32 32, 32
          %826 = vsyncadd %s817, %s825
          %s827 = smul.addr %s23, 32
          %s828 = scalar_lea.hbm %s9, %s827
          %s830 = sshll.u32 %s820, 4
          %s831 = int_to_ptr.vmem [resolvable:$true] %s830
          %833 = dma.vmem_to_hbm [thread:$0]  %s831, 32, %s828, %s817
        $region60: #{tpu_custom_call.1} parent=55 // pred_fallthru
          _
      $region56: #{tpu_custom_call.1} parent=5 // pred_fallthru
        _
      %p834 = scmp.le.s32.totalorder 2, %s18
      // Predicated region
      $region61: #{tpu_custom_call.1} parent=5 // pred_check
        %p835 = pneg %p834
      $region62: #{tpu_custom_call.1} parent=5 // pred_check_branch
        %837 = sbr.rel (%p835) target = $region64
      $region63: #{tpu_custom_call.1} parent=5 // pred_region
        %s838 = ssub.s32 %s18, 2
        // Predicated region
        $region65: #{tpu_custom_call.1} parent=63 // pred_check
          %p839 = pneg %p256
        $region66: #{tpu_custom_call.1} parent=63 // pred_check_branch
          %841 = sbr.rel (%p839) target = $region68
        $region67: #{tpu_custom_call.1} parent=63 // pred_region
          %s842 = sand.u32 %s241, 1
          %s843 = scalar_lea.sflag [#allocation3], %s842
          %s844 = sand.u32 %s241, 1
          %s845 = smul.addr %s844, 2
          %s846 = scalar_lea.vmem [#allocation2], %s845
          %847 = dma.done %s843, 32
        $region68: #{tpu_custom_call.1} parent=63 // pred_fallthru
          _
      $region64: #{tpu_custom_call.1} parent=5 // pred_fallthru
        _
    $region6: #{tpu_custom_call.1} parent=1 // loop_footer
      %s22 = sadd.s32 1, %s18
    $region7: #{tpu_custom_call.1} parent=1 // loop_footer_branch
      %17 = sbr.rel target = $region3
    $region8: #{tpu_custom_call.1} parent=1 // loop_exit
      _
    %848 = vsyncpa [#allocation3], 1
    %s849 = scalar_lea.sflag [#allocation3], 1
    %850 = vsyncpa %s849, 1

</llo_original>
